<compile_context>
chip_gen: v5e
topology: v5e:2x2
jax: 0.10.0
libtpu: 0.0.40
codegen_flags: <defaults>
</compile_context>

<pallas_src>
import math
import functools

import jax
import jax.numpy as jnp
from jax import lax
from jax.experimental import pallas as pl
from jax.experimental.pallas import tpu as pltpu


def _round_up(x, m):
    return ((x + m - 1) // m) * m


# ----------------------------------------------------------------------------
# Kernel 1: tiled dense projection  y = x @ W + b  (in_proj and out_proj)
# ----------------------------------------------------------------------------
def _linear_kernel(x_ref, w_ref, b_ref, o_ref, acc_ref):
    @pl.when(pl.program_id(2) == 0)
    def _():
        acc_ref[...] = jnp.zeros_like(acc_ref)

    # bf16 on the MXU, f32 accumulation.
    acc_ref[...] += jnp.dot(
        x_ref[...].astype(jnp.bfloat16),
        w_ref[...].astype(jnp.bfloat16),
        preferred_element_type=jnp.float32,
    )

    @pl.when(pl.program_id(2) == pl.num_programs(2) - 1)
    def _():
        o_ref[...] = (acc_ref[...] + b_ref[...].astype(jnp.float32)).astype(o_ref.dtype)


def linear(x2d, w, b, *, tm=512, tk=1024, tn=512):
    """y = x2d @ w + b with a tiled, software-pipelined Pallas matmul."""
    M, K = x2d.shape
    K2, Nout = w.shape
    assert K == K2

    # Shrink tiles for small problems while keeping (8, 128) alignment.
    tm = min(tm, _round_up(M, 8))
    tk = min(tk, _round_up(K, 128))
    tn = min(tn, _round_up(Nout, 128))
    Mp, Kp, Np = _round_up(M, tm), _round_up(K, tk), _round_up(Nout, tn)

    xp = x2d if (Mp == M and Kp == K) else jnp.pad(x2d, ((0, Mp - M), (0, Kp - K)))
    wp = w if (Kp == K and Np == Nout) else jnp.pad(w, ((0, Kp - K), (0, Np - Nout)))
    bp = (b if Np == Nout else jnp.pad(b, (0, Np - Nout))).reshape(1, Np)

    grid = (Mp // tm, Np // tn, Kp // tk)
    out = pl.pallas_call(
        _linear_kernel,
        out_shape=jax.ShapeDtypeStruct((Mp, Np), x2d.dtype),
        grid_spec=pltpu.PrefetchScalarGridSpec(
            num_scalar_prefetch=0,
            grid=grid,
            in_specs=[
                pl.BlockSpec((tm, tk), lambda i, j, k: (i, k)),
                pl.BlockSpec((tk, tn), lambda i, j, k: (k, j)),
                pl.BlockSpec((1, tn), lambda i, j, k: (0, j)),
            ],
            out_specs=pl.BlockSpec((tm, tn), lambda i, j, k: (i, j)),
            scratch_shapes=[pltpu.VMEM((tm, tn), jnp.float32)],
        ),
        compiler_params=pltpu.CompilerParams(
            dimension_semantics=("parallel", "parallel", "arbitrary"),
            vmem_limit_bytes=32 * 1024 * 1024),
    )(xp, wp, bp)
    return out[:M, :Nout]


# ----------------------------------------------------------------------------
# Kernel 2: flash-style attention directly on the fused in_proj output.
#   qkv layout (N, Lp, 3, H, Dh); grid (N, H/hc, Lp/tq, Lp/tk), kv axis last.
#   Online softmax in f32 scratch; normalize after PV with an EUP reciprocal.
# ----------------------------------------------------------------------------
def _flash_attn_kernel(q_ref, k_ref, v_ref, o_ref, m_sc, l_sc, acc_sc, *,
                       scale, seq_len, kv_tile, masked):
    kv = pl.program_id(3)

    @pl.when(kv == 0)
    def _():
        m_sc[...] = jnp.full(m_sc.shape, -jnp.inf, dtype=m_sc.dtype)
        l_sc[...] = jnp.zeros_like(l_sc)
        acc_sc[...] = jnp.zeros_like(acc_sc)

    # Blocks arrive as (tile, hc, Dh); relayout to head-major (hc, tile, Dh)
    # inside VMEM (cheap vs. the HBM transposes this replaces).
    q = (jnp.transpose(q_ref[...], (1, 0, 2)) * scale).astype(jnp.bfloat16)
    k = jnp.transpose(k_ref[...], (1, 0, 2)).astype(jnp.bfloat16)
    v = jnp.transpose(v_ref[...], (1, 0, 2)).astype(jnp.bfloat16)

    # Batched over heads; contraction on the last dim (no explicit k.T).
    s = jnp.einsum("hqd,hkd->hqk", q, k, preferred_element_type=jnp.float32)
    if masked:
        # Zero-padded key columns (col >= seq_len) must not receive weight.
        col = kv * kv_tile + lax.broadcasted_iota(jnp.int32, (1, 1, kv_tile), 2)
        s = jnp.where(col < seq_len, s, jnp.float32(-1e30))
    # TODO(synk): additive / boolean attn_mask support (attn_mask=None path only).

    m_prev = m_sc[...]
    m_new = jnp.maximum(m_prev, jnp.max(s, axis=-1, keepdims=True))
    alpha = jnp.exp(m_prev - m_new)
    p = jnp.exp(s - m_new)
    l_sc[...] = alpha * l_sc[...] + jnp.sum(p, axis=-1, keepdims=True)
    acc_sc[...] = alpha * acc_sc[...] + jnp.einsum(
        "hqk,hkd->hqd", p.astype(jnp.bfloat16), v,
        preferred_element_type=jnp.float32)
    m_sc[...] = m_new

    @pl.when(kv == pl.num_programs(3) - 1)
    def _():
        o = acc_sc[...] * pl.reciprocal(l_sc[...], approx=True)
        # Write back in (tq, hc, Dh) so the wrapper-side head merge is a free
        # reshape instead of an HBM transpose.
        o_ref[...] = jnp.transpose(o, (1, 0, 2)).astype(o_ref.dtype)


def _attn_config(H, L, Dh, budget_bytes=12 * 1024 * 1024):
    """Pick (padded length, q tile, kv tile, heads per block)."""
    # Only pad long sequences; short ones run as a single kv block unmasked.
    Lp = L if L <= 256 else _round_up(L, 128)

    def pick_tile(target):
        if Lp <= target:
            return Lp
        for t in (target, 128, 64, 32, 16, 8):
            if Lp % t == 0:
                return t
        return Lp

    tq = pick_tile(256)
    tk = pick_tile(256)

    # Trailing block dims are (hc, Dh): hc must be a multiple of 8 or == H.
    valid_hc = [h for h in range(H, 0, -1) if H % h == 0 and (h % 8 == 0 or h == H)]
    hc = valid_hc[-1]
    for h in valid_hc:  # largest head block whose working set fits the budget
        est = 4 * h * (3 * tq * tk + 4 * tq * Dh + 6 * tk * Dh)
        if est <= budget_bytes:
            hc = h
            break
    return Lp, tq, tk, hc


def attention_core(qkv, scale, *, seq_len, hc, tq, tk):
    N, Lp, three, H, Dh = qkv.shape
    assert three == 3
    masked = (Lp != seq_len)
    kern = functools.partial(_flash_attn_kernel, scale=scale, seq_len=seq_len,
                             kv_tile=tk, masked=masked)

    q_spec = pl.BlockSpec((None, tq, None, hc, Dh),
                          lambda n, g, qi, ki: (n, qi, 0, g, 0))
    k_spec = pl.BlockSpec((None, tk, None, hc, Dh),
                          lambda n, g, qi, ki: (n, ki, 1, g, 0))
    v_spec = pl.BlockSpec((None, tk, None, hc, Dh),
                          lambda n, g, qi, ki: (n, ki, 2, g, 0))
    o_spec = pl.BlockSpec((None, tq, hc, Dh),
                          lambda n, g, qi, ki: (n, qi, g, 0))

    grid = (N, H // hc, Lp // tq, Lp // tk)
    return pl.pallas_call(
        kern,
        out_shape=jax.ShapeDtypeStruct((N, Lp, H, Dh), qkv.dtype),
        grid_spec=pltpu.PrefetchScalarGridSpec(
            num_scalar_prefetch=0,
            grid=grid,
            in_specs=[q_spec, k_spec, v_spec],
            out_specs=o_spec,
            scratch_shapes=[
                pltpu.VMEM((hc, tq, 1), jnp.float32),   # running max
                pltpu.VMEM((hc, tq, 1), jnp.float32),   # running sum
                pltpu.VMEM((hc, tq, Dh), jnp.float32),  # output accumulator
            ]),
        compiler_params=pltpu.CompilerParams(
            dimension_semantics=("parallel", "parallel", "parallel", "arbitrary"),
            vmem_limit_bytes=32 * 1024 * 1024),
    )(qkv, qkv, qkv)


# ----------------------------------------------------------------------------
# Full forward pass (wrapper glue is reshapes / pad / slice only — no HBM
# transposes).
# ----------------------------------------------------------------------------
def attention_forward(x, params, num_heads):
    N, L, C = x.shape
    H = num_heads
    Dh = C // H
    scale = Dh ** -0.5

    Lp, tq, tk, hc = _attn_config(H, L, Dh)
    xp = x if Lp == L else jnp.pad(x, ((0, 0), (0, Lp - L), (0, 0)))

    qkv = linear(xp.reshape(N * Lp, C), params["w_in"], params["b_in"])  # (N*Lp, 3C)
    qkv = qkv.reshape(N, Lp, 3, H, Dh)                                   # free reshape

    o = attention_core(qkv, scale, seq_len=L, hc=hc, tq=tq, tk=tk)       # (N, Lp, H, Dh)

    out = linear(o.reshape(N * Lp, C), params["w_out"], params["b_out"]) # (N*Lp, C)
    out = out.reshape(N, Lp, C)
    return out if Lp == L else out[:, :L, :]


# ----------------------------------------------------------------------------
# Pure-JAX (f32) reference for correctness checking
# ----------------------------------------------------------------------------
def attention_reference(x, params, num_heads):
    N, L, C = x.shape
    H = num_heads
    Dh = C // H
    qkv = x @ params["w_in"] + params["b_in"]
    q, k, v = jnp.split(qkv, 3, axis=-1)
    q = q.reshape(N, L, H, Dh).transpose(0, 2, 1, 3)
    k = k.reshape(N, L, H, Dh).transpose(0, 2, 1, 3)
    v = v.reshape(N, L, H, Dh).transpose(0, 2, 1, 3)
    s = jnp.einsum("nhqd,nhkd->nhqk", q, k) * (Dh ** -0.5)
    p = jax.nn.softmax(s, axis=-1)
    o = jnp.einsum("nhqk,nhkd->nhqd", p, v)
    o = o.transpose(0, 2, 1, 3).reshape(N, L, C)
    return o @ params["w_out"] + params["b_out"]


# ----------------------------------------------------------------------------
# Deterministic parameter construction (matches __init__ shapes)
# ----------------------------------------------------------------------------
def make_params(key, dim, num_heads):
    head_dim = dim // num_heads
    scale = head_dim ** -0.5
    k_in, k_wout, k_bout = jax.random.split(key, 3)
    # in_proj_weight: torch shape (3*dim, dim), scaled randn; stored transposed.
    w_in_t = jax.random.normal(k_in, (3 * dim, dim), jnp.float32) * scale
    w_in = jnp.transpose(w_in_t)                       # (dim, 3*dim)
    b_in = jnp.zeros((3 * dim,), jnp.float32)          # qkv_bias=True -> zeros
    # out_proj: nn.Linear(dim, dim), uniform(-1/sqrt(dim), 1/sqrt(dim)); transposed.
    bound = 1.0 / math.sqrt(dim)
    w_out_t = jax.random.uniform(k_wout, (dim, dim), jnp.float32, -bound, bound)
    w_out = jnp.transpose(w_out_t)                     # (dim, dim)
    b_out = jax.random.uniform(k_bout, (dim,), jnp.float32, -bound, bound)
    return {"w_in": w_in, "b_in": b_in, "w_out": w_out, "b_out": b_out}


if __name__ == "__main__":
    key = jax.random.PRNGKey(0)

    def run_case(N, L, C, H, case_key):
        k_x, k_p = jax.random.split(case_key)
        x = jax.random.normal(k_x, (N, L, C), jnp.float32)
        params = make_params(k_p, C, H)
        out = jax.block_until_ready(attention_forward(x, params, H))
        ref = attention_reference(x, params, H)
        assert out.shape == (N, L, C)
        # bf16 MXU operands + approximate reciprocal => loosened tolerance.
        assert jnp.allclose(out, ref, atol=1e-1, rtol=1e-1), (
            f"case {(N, L, C, H)}: max err {jnp.max(jnp.abs(out - ref))}")

    k1, k2 = jax.random.split(key)
    # Tiny shape: single kv block, heads-per-block == H, no padding.
    run_case(2, 8, 32, 8, k1)
    # Non-tile-aligned sequence: exercises seq padding, key-pad masking and the
    # multi-step online-softmax (flash) kv loop.
    run_case(1, 300, 64, 8, k2)

    print("KERNEL_OK")
</pallas_src>

<mosaic_0001>
module attributes {stable_mosaic.version = 11 : i64} {
  func.func @_linear_kernel(%arg0: i32, %arg1: i32, %arg2: i32, %arg3: memref<16x128xf32, #tpu.memory_space<vmem>>, %arg4: memref<128x128xf32, #tpu.memory_space<vmem>>, %arg5: memref<1x128xf32, #tpu.memory_space<vmem>>, %arg6: memref<16x128xf32, #tpu.memory_space<vmem>>, %arg7: memref<16x128xf32, #tpu.memory_space<vmem>>) attributes {dimension_semantics = [#tpu.dimension_semantics<parallel>, #tpu.dimension_semantics<parallel>, #tpu.dimension_semantics<arbitrary>], iteration_bounds = array<i64: 1, 1, 1>, scalar_prefetch = 0 : i64, scratch_operands = 1 : i64, tpu.core_type = #tpu.core_type<tc>, window_params = [{transform_indices = @transform_0, window_bounds = array<i64: 16, 128>}, {transform_indices = @transform_1, window_bounds = array<i64: 128, 128>}, {transform_indices = @transform_2, window_bounds = array<i64: 1, 128>}, {transform_indices = @transform_3, window_bounds = array<i64: 16, 128>}]} {
    %c0_i32 = arith.constant 0 : i32
    %0 = arith.cmpi eq, %arg2, %c0_i32 : i32
    %1 = arith.extui %0 : i1 to i32
    %c0_i32_0 = arith.constant 0 : i32
    %2 = arith.cmpi ne, %1, %c0_i32_0 : i32
    scf.if %2 {
      %cst_10 = arith.constant 0.000000e+00 : f32
      %14 = vector.broadcast %cst_10 : f32 to vector<16x128xf32>
      %c0_11 = arith.constant 0 : index
      %c0_12 = arith.constant 0 : index
      %15 = vector.load %arg7[%c0_11, %c0_12] : memref<16x128xf32, #tpu.memory_space<vmem>>, vector<16x128xf32>
      tpu.vector_store %arg7[%c0_11, %c0_12], %14 {strides = array<i32>} : memref<16x128xf32, #tpu.memory_space<vmem>>, vector<16x128xf32>,
    } else {
    }
    %c0 = arith.constant 0 : index
    %c0_1 = arith.constant 0 : index
    %3 = vector.load %arg7[%c0, %c0_1] : memref<16x128xf32, #tpu.memory_space<vmem>>, vector<16x128xf32>
    %c0_2 = arith.constant 0 : index
    %c0_3 = arith.constant 0 : index
    %4 = vector.load %arg3[%c0_2, %c0_3] : memref<16x128xf32, #tpu.memory_space<vmem>>, vector<16x128xf32>
    %5 = arith.truncf %4 : vector<16x128xf32> to vector<16x128xbf16>
    %c0_4 = arith.constant 0 : index
    %c0_5 = arith.constant 0 : index
    %6 = vector.load %arg4[%c0_4, %c0_5] : memref<128x128xf32, #tpu.memory_space<vmem>>, vector<128x128xf32>
    %7 = arith.truncf %6 : vector<128x128xf32> to vector<128x128xbf16>
    %cst = arith.constant dense<0.000000e+00> : vector<16x128xf32>
    %8 = tpu.matmul %5, %7, %cst {dimension_numbers = #tpu.dot_dimension_numbers<[1], [0], [0], [1], [0, 0, 1, 1], [], []>} : vector<16x128xbf16>, vector<128x128xbf16>, vector<16x128xf32> -> vector<16x128xf32>
    %9 = arith.addf %3, %8 : vector<16x128xf32>
    %c0_6 = arith.constant 0 : index
    %c0_7 = arith.constant 0 : index
    %10 = vector.load %arg7[%c0_6, %c0_7] : memref<16x128xf32, #tpu.memory_space<vmem>>, vector<16x128xf32>
    tpu.vector_store %arg7[%c0_6, %c0_7], %9 {strides = array<i32>} : memref<16x128xf32, #tpu.memory_space<vmem>>, vector<16x128xf32>,
    %c0_i32_8 = arith.constant 0 : i32
    %11 = arith.cmpi eq, %arg2, %c0_i32_8 : i32
    %12 = arith.extui %11 : i1 to i32
    %c0_i32_9 = arith.constant 0 : i32
    %13 = arith.cmpi ne, %12, %c0_i32_9 : i32
    scf.if %13 {
      %c0_10 = arith.constant 0 : index
      %c0_11 = arith.constant 0 : index
      %14 = vector.load %arg7[%c0_10, %c0_11] : memref<16x128xf32, #tpu.memory_space<vmem>>, vector<16x128xf32>
      %c0_12 = arith.constant 0 : index
      %c0_13 = arith.constant 0 : index
      %15 = vector.load %arg5[%c0_12, %c0_13] : memref<1x128xf32, #tpu.memory_space<vmem>>, vector<1x128xf32>
      %16 = vector.broadcast %15 : vector<1x128xf32> to vector<16x128xf32>
      %17 = arith.addf %14, %16 : vector<16x128xf32>
      %c0_14 = arith.constant 0 : index
      %c0_15 = arith.constant 0 : index
      %18 = vector.load %arg6[%c0_14, %c0_15] : memref<16x128xf32, #tpu.memory_space<vmem>>, vector<16x128xf32>
      tpu.vector_store %arg6[%c0_14, %c0_15], %17 {strides = array<i32>} : memref<16x128xf32, #tpu.memory_space<vmem>>, vector<16x128xf32>,
    } else {
    }
    return
  }
  func.func @transform_0(%arg0: i32, %arg1: i32, %arg2: i32) -> (i32, i32) {
    %c0_i32 = arith.constant 0 : i32
    return %arg0, %arg2 : i32, i32
  }
  func.func @transform_1(%arg0: i32, %arg1: i32, %arg2: i32) -> (i32, i32) {
    %c0_i32 = arith.constant 0 : i32
    return %arg2, %arg1 : i32, i32
  }
  func.func @transform_2(%arg0: i32, %arg1: i32, %arg2: i32) -> (i32, i32) {
    %c0_i32 = arith.constant 0 : i32
    %c0_i32_0 = arith.constant 0 : i32
    return %c0_i32, %arg1 : i32, i32
  }
  func.func @transform_3(%arg0: i32, %arg1: i32, %arg2: i32) -> (i32, i32) {
    %c0_i32 = arith.constant 0 : i32
    return %arg0, %arg1 : i32, i32
  }
}

</mosaic_0001>

<llo_original>
// kernel: tpu_custom_call.1
$region0: #{tpu_custom_call.1}
  #allocation0 [shape = 'u32[]', space=smem, size = 0x4, offset = 0x4, fixed_abs, tag = 'smem constant byte address 0x4 - core index']
  #allocation1 [shape = 'u32[72,128]{1,0:T(1,128)}', space=vmem, size = 0x9000, scoped, tag = 'internal scratch']
  #allocation2 [shape = 'f32[16,128]{1,0:T(8,128)}', space=vmem, size = 0x2000, scoped, tag = 'scratch operand']
  %s0 = inlined_call_operand.hbm [shape: f32[16,128], index: 0, kind: input, shape index: {}]
  %s1 = inlined_call_operand.hbm [shape: f32[128,128], index: 1, kind: input, shape index: {}]
  %s2 = inlined_call_operand.vmem [shape: f32[1,128], index: 2, kind: input, shape index: {}]
  %s3 = inlined_call_operand.hbm [shape: f32[16,128], index: 3, kind: output, shape index: {}]
  %s4 = sld [smem:[#allocation0]]
  $region38: #{tpu_custom_call.1} parent=0
    _
  %s6 = ssub.s32 1, %s4
  %s7 = scalar_select 0, %s6, %s4
  $region1: #{tpu_custom_call.1} parent=0
    #allocation3 [shape = 'u8[8192]{0}', space=vmem, size = 0x2000, scoped, tag = 'input window, operand 0, single buffered']
    #allocation4 [shape = 's32[1]{0}', space=sflag, size = 0x4, scoped, tag = 'scoped memory for tpu_custom_call.1']
    #allocation5 [shape = 's32[1]{0}', space=sflag, size = 0x4, scoped, tag = 'scoped memory for tpu_custom_call.1']
    #allocation6 [shape = 'u8[65536]{0}', space=vmem, size = 0x10000, scoped, tag = 'input window, operand 1, single buffered']
    #allocation7 [shape = 's32[1]{0}', space=sflag, size = 0x4, scoped, tag = 'scoped memory for tpu_custom_call.1']
    #allocation8 [shape = 'u8[8192]{0}', space=vmem, size = 0x2000, scoped, tag = 'output window, operand 0, single buffered']
    %8 = vsyncpa [#allocation4], 0
    %9 = vsyncpa [#allocation7], 0
    %10 = vsyncpa [#allocation5], 0
    // Predicated region
    $region2: #{tpu_custom_call.1} parent=1 // pred_check
      _
    $region3: #{tpu_custom_call.1} parent=1 // pred_check_branch
      %12 = sbr.rel (0) target = $region5
    $region4: #{tpu_custom_call.1} parent=1 // pred_region
      %14 = vsyncadd [#allocation4], 0
      %s15 = sshll.u32 %s0, 4
      %s16 = int_to_ptr.hbm [resolvable:$true] %s15
      %s17 = sshll.u32 [#allocation3], 4
      %s18 = int_to_ptr.vmem [resolvable:$true] %s17
      %23 = dma.hbm_to_vmem [thread:$0]  %s16, 256, %s18, [#allocation4], 128, 128, 8
    $region5: #{tpu_custom_call.1} parent=1 // pred_fallthru
      _
    // Predicated region
    $region6: #{tpu_custom_call.1} parent=1 // pred_check
      _
    $region7: #{tpu_custom_call.1} parent=1 // pred_check_branch
      %25 = sbr.rel (0) target = $region9
    $region8: #{tpu_custom_call.1} parent=1 // pred_region
      %27 = vsyncadd [#allocation7], 0
      %s28 = sshll.u32 %s1, 4
      %s29 = int_to_ptr.hbm [resolvable:$true] %s28
      %s30 = sshll.u32 [#allocation6], 4
      %s31 = int_to_ptr.vmem [resolvable:$true] %s30
      %36 = dma.hbm_to_vmem [thread:$0]  %s29, 2048, %s31, [#allocation7], 128, 128, 8
    $region9: #{tpu_custom_call.1} parent=1 // pred_fallthru
      _
    // Predicated region
    $region10: #{tpu_custom_call.1} parent=1 // pred_check
      _
    $region11: #{tpu_custom_call.1} parent=1 // pred_check_branch
      %38 = sbr.rel (0) target = $region13
    $region12: #{tpu_custom_call.1} parent=1 // pred_region
      _
    $region13: #{tpu_custom_call.1} parent=1 // pred_fallthru
      _
    // Predicated region
    $region14: #{tpu_custom_call.1} parent=1 // pred_check
      _
    $region15: #{tpu_custom_call.1} parent=1 // pred_check_branch
      %40 = sbr.rel (0) target = $region17
    $region16: #{tpu_custom_call.1} parent=1 // pred_region
      %42 = dma.done [#allocation4], 256
    $region17: #{tpu_custom_call.1} parent=1 // pred_fallthru
      _
    // Predicated region
    $region18: #{tpu_custom_call.1} parent=1 // pred_check
      _
    $region19: #{tpu_custom_call.1} parent=1 // pred_check_branch
      %44 = sbr.rel (0) target = $region21
    $region20: #{tpu_custom_call.1} parent=1 // pred_region
      %46 = dma.done [#allocation7], 2048
    $region21: #{tpu_custom_call.1} parent=1 // pred_fallthru
      _
    %p47 = scmp.eq.s32.totalorder 0, 0
    // Predicated region
    $region22: #{tpu_custom_call.1} parent=1 // pred_check
      %p48 = pneg %p47
    $region23: #{tpu_custom_call.1} parent=1 // pred_check_branch
      %50 = sbr.rel (%p48) target = $region25
    $region24: #{tpu_custom_call.1} parent=1 // pred_region
      %51 = vst [vmem:[#allocation2] sm:$0xff] 0.0
      %52 = vst [vmem:[#allocation2 + $0x8] sm:$0xff] 0.0
    $region25: #{tpu_custom_call.1} parent=1 // pred_fallthru
      _
    %v53 = vld [vmem:[#allocation2] sm:$0xff]
    %v54 = vld [vmem:[#allocation2 + $0x8] sm:$0xff]
    %v55 = vld [vmem:[#allocation3] sm:$0xff]
    %v56 = vld [vmem:[#allocation3 + $0x8] sm:$0xff]
    %v57 = vpack.c.bf16 %v56, %v55
    %v58 = vld [vmem:[#allocation6] sm:$0xff]
    %v59 = vld [vmem:[#allocation6 + $0x8] sm:$0xff]
    %v60 = vld [vmem:[#allocation6 + $0x10] sm:$0xff]
    %v61 = vld [vmem:[#allocation6 + $0x18] sm:$0xff]
    %v62 = vld [vmem:[#allocation6 + $0x20] sm:$0xff]
    %v63 = vld [vmem:[#allocation6 + $0x28] sm:$0xff]
    %v64 = vld [vmem:[#allocation6 + $0x30] sm:$0xff]
    %v65 = vld [vmem:[#allocation6 + $0x38] sm:$0xff]
    %v66 = vld [vmem:[#allocation6 + $0x40] sm:$0xff]
    %v67 = vld [vmem:[#allocation6 + $0x48] sm:$0xff]
    %v68 = vld [vmem:[#allocation6 + $0x50] sm:$0xff]
    %v69 = vld [vmem:[#allocation6 + $0x58] sm:$0xff]
    %v70 = vld [vmem:[#allocation6 + $0x60] sm:$0xff]
    %v71 = vld [vmem:[#allocation6 + $0x68] sm:$0xff]
    %v72 = vld [vmem:[#allocation6 + $0x70] sm:$0xff]
    %v73 = vld [vmem:[#allocation6 + $0x78] sm:$0xff]
    %v74 = vpack.c.bf16 %v59, %v58
    %v75 = vpack.c.bf16 %v61, %v60
    %v76 = vpack.c.bf16 %v63, %v62
    %v77 = vpack.c.bf16 %v65, %v64
    %v78 = vpack.c.bf16 %v67, %v66
    %v79 = vpack.c.bf16 %v69, %v68
    %v80 = vpack.c.bf16 %v71, %v70
    %v81 = vpack.c.bf16 %v73, %v72
    %82 = vmatpush.bf16.msra.mxu0 %v81
    %83 = vmatpush.bf16.msra.mxu0 %v80
    %84 = vmatpush.bf16.msra.mxu0 %v79
    %85 = vmatpush.bf16.msra.mxu0 %v78
    %86 = vmatpush.bf16.msra.mxu0 %v77
    %87 = vmatpush.bf16.msra.mxu0 %v76
    %88 = vmatpush.bf16.msra.mxu0 %v75
    %89 = vmatpush.bf16.msra.mxu0 %v74
    %90 = vmatmul.bf16.gmra.mxu0 %v57
    %v91 = vpop.f32.mrf.mxu0
    %v92 = vadd.f32 0.0, %v91
    %v93 = vpop.f32.mrf.mxu0
    %v94 = vadd.f32 0.0, %v93
    %95 = vdwg.mxu0
    %v96 = vadd.f32 %v53, %v92
    %v97 = vadd.f32 %v54, %v94
    %98 = vst [vmem:[#allocation2] sm:$0xff] %v96
    %99 = vst [vmem:[#allocation2 + $0x8] sm:$0xff] %v97
    // Predicated region
    $region26: #{tpu_custom_call.1} parent=1 // pred_check
      %p100 = pneg %p47
    $region27: #{tpu_custom_call.1} parent=1 // pred_check_branch
      %102 = sbr.rel (%p100) target = $region29
    $region28: #{tpu_custom_call.1} parent=1 // pred_region
      %v103 = vld [vmem:[#allocation2] sm:$0xff]
      %v104 = vld [vmem:[#allocation2 + $0x8] sm:$0xff]
      %v105 = vld [vmem:[%s2] sm:$0x1]
      %v107 = vperm.slane %v105, 0
      %v109 = vadd.f32 %v103, %v107
      %v110 = vadd.f32 %v104, %v107
      %111 = vst [vmem:[#allocation8] sm:$0xff] %v109
      %112 = vst [vmem:[#allocation8 + $0x8] sm:$0xff] %v110
    $region29: #{tpu_custom_call.1} parent=1 // pred_fallthru
      _
    // Predicated region
    $region30: #{tpu_custom_call.1} parent=1 // pred_check
      _
    $region31: #{tpu_custom_call.1} parent=1 // pred_check_branch
      %114 = sbr.rel (0) target = $region33
    $region32: #{tpu_custom_call.1} parent=1 // pred_region
      %116 = vsyncadd [#allocation5], 0
      %s117 = sshll.u32 [#allocation8], 4
      %s118 = int_to_ptr.vmem [resolvable:$true] %s117
      %s119 = sshll.u32 %s3, 4
      %s120 = int_to_ptr.hbm [resolvable:$true] %s119
      %125 = dma.vmem_to_hbm [thread:$0]  %s118, 256, %s120, [#allocation5], 128, 128, 8
    $region33: #{tpu_custom_call.1} parent=1 // pred_fallthru
      _
    // Predicated region
    $region34: #{tpu_custom_call.1} parent=1 // pred_check
      _
    $region35: #{tpu_custom_call.1} parent=1 // pred_check_branch
      %127 = sbr.rel (0) target = $region37
    $region36: #{tpu_custom_call.1} parent=1 // pred_region
      %129 = dma.done [#allocation5], 256
    $region37: #{tpu_custom_call.1} parent=1 // pred_fallthru
      _
    %130 = vsyncpa [#allocation4], 1
    %131 = vsyncpa [#allocation7], 1
    %132 = vsyncpa [#allocation5], 1

</llo_original>
